<compile_context>
chip_gen: v7x
topology: tpu7x:2x2x1
jax: 0.10.0
libtpu: 0.0.40
codegen_flags: <defaults>
</compile_context>

<pallas_src>
import jax
import jax.numpy as jnp
from jax.experimental import pallas as pl
from jax.experimental.pallas import tpu as pltpu

# Small, TPU-friendly synthetic sizes (stand-ins for vocab_size / hidden_layer_size=300)
BATCH = 2
CONTEXT = 8
VOCAB = 256
HIDDEN = 128


def cbow_kernel(x_ref, mask_ref, w1_ref, b1_ref, w2_ref, b2_ref, out_ref):
    # x_ref    : (Bp, C, V) bf16
    # mask_ref : (Bp, C)    f32
    # w1_ref   : (V, H)     bf16   (Linear(V,H).weight.T)
    # b1_ref   : (1, H)     f32
    # w2_ref   : (H, V)     bf16   (Linear(H,V).weight.T)
    # b2_ref   : (1, V)     f32
    # out_ref  : (Bp, V)    f32
    m = mask_ref[...]                                   # (Bp, C) f32
    x = x_ref[...].astype(jnp.float32)                  # (Bp, C, V) f32

    # Fold the context-mask reduction before layer 1 (VPU weighted sum over C).
    mx = jnp.sum(m[:, :, None] * x, axis=1)             # (Bp, V) f32
    msum = jnp.sum(m, axis=1, keepdims=True)            # (Bp, 1) f32  (bias scale)

    # Layer 1: (Bp, V) @ (V, H) on the MXU, f32 accumulation.
    h = jnp.dot(mx.astype(jnp.bfloat16), w1_ref[...],
                preferred_element_type=jnp.float32)
    h = h + msum * b1_ref[...]                           # (Bp, H) f32

    # Layer 2: (Bp, H) @ (H, V) on the MXU, f32 accumulation.
    out = jnp.dot(h.astype(jnp.bfloat16), w2_ref[...],
                  preferred_element_type=jnp.float32) + b2_ref[...]

    out_ref[...] = out.astype(out_ref.dtype)             # lane-dense (Bp, V) store


def cbow_forward(x, normed_mask, w1_t, b1, w2_t, b2):
    B, C, V = x.shape
    H = w1_t.shape[1]

    # Pad batch up to a multiple of 8 so the matmul LHS fills full sublanes.
    B_pad = max(8, ((B + 7) // 8) * 8)
    if B_pad != B:
        x = jnp.pad(x, ((0, B_pad - B), (0, 0), (0, 0)))
        normed_mask = jnp.pad(normed_mask, ((0, B_pad - B), (0, 0), (0, 0)))

    # Cast HBM-heavy operands to bf16 at the boundary; keep biases/mask in f32.
    x_bf = x.astype(jnp.bfloat16)
    mask2d = normed_mask.reshape(B_pad, C).astype(jnp.float32)
    w1_bf = w1_t.astype(jnp.bfloat16)
    w2_bf = w2_t.astype(jnp.bfloat16)
    b1_2d = b1.reshape(1, H).astype(jnp.float32)
    b2_2d = b2.reshape(1, V).astype(jnp.float32)

    flops = 2 * B_pad * (V * H + H * V) + 2 * B_pad * C * V
    bytes_accessed = (
        x_bf.size * 2 + mask2d.size * 4 + w1_bf.size * 2 + w2_bf.size * 2
        + b1_2d.size * 4 + b2_2d.size * 4 + B_pad * V * 4
    )

    out = pl.pallas_call(
        cbow_kernel,
        out_shape=jax.ShapeDtypeStruct((B_pad, V), jnp.float32),
        grid=(1,),
        in_specs=[
            pl.BlockSpec((B_pad, C, V), lambda i: (0, 0, 0)),  # x (bf16)
            pl.BlockSpec((B_pad, C), lambda i: (0, 0)),        # normed_mask (f32)
            pl.BlockSpec((V, H), lambda i: (0, 0)),            # W1^T (bf16, full-resident)
            pl.BlockSpec((1, H), lambda i: (0, 0)),            # b1
            pl.BlockSpec((H, V), lambda i: (0, 0)),            # W2^T (bf16, full-resident)
            pl.BlockSpec((1, V), lambda i: (0, 0)),            # b2
        ],
        out_specs=pl.BlockSpec((B_pad, V), lambda i: (0, 0)),
        cost_estimate=pl.CostEstimate(
            flops=flops, transcendentals=0, bytes_accessed=bytes_accessed),
        compiler_params=pltpu.CompilerParams(
            dimension_semantics=("arbitrary",),
        ),
    )(x_bf, mask2d, w1_bf, b1_2d, w2_bf, b2_2d)

    return out[:B]


def reference_forward(x, normed_mask, w1_t, b1, w2_t, b2):
    hidden = jnp.einsum("bcv,vh->bch", x, w1_t) + b1           # (B, C, H)
    masked = jnp.einsum("bqc,bch->bqh", normed_mask, hidden)   # (B, 1, H)
    out = jnp.einsum("bh,hv->bv", masked[:, 0, :], w2_t) + b2  # (B, V)
    return out


if __name__ == "__main__":
    key = jax.random.PRNGKey(0)
    k_x, k_m, k_w1, k_b1, k_w2, k_b2 = jax.random.split(key, 6)

    # Deterministic synthetic parameters (shapes from the module's __init__),
    # stored pre-transposed so the kernel does plain row-major matmuls.
    w1_t = jax.random.normal(k_w1, (VOCAB, HIDDEN), jnp.float32) * 0.02  # Linear(V,H).weight.T
    b1 = jax.random.normal(k_b1, (HIDDEN,), jnp.float32) * 0.02
    w2_t = jax.random.normal(k_w2, (HIDDEN, VOCAB), jnp.float32) * 0.02  # Linear(H,V).weight.T
    b2 = jax.random.normal(k_b2, (VOCAB,), jnp.float32) * 0.02

    # Inputs: context rows over the vocab and a normalized averaging mask.
    x = jax.random.normal(k_x, (BATCH, CONTEXT, VOCAB), jnp.float32)
    mask_raw = jnp.abs(jax.random.normal(k_m, (BATCH, 1, CONTEXT), jnp.float32)) + 0.1
    normed_mask = mask_raw / jnp.sum(mask_raw, axis=-1, keepdims=True)

    out = cbow_forward(x, normed_mask, w1_t, b1, w2_t, b2)
    jax.block_until_ready(out)

    ref = reference_forward(x, normed_mask, w1_t, b1, w2_t, b2)
    assert out.shape == (BATCH, VOCAB)
    # bf16 weights/activations inside the kernel -> relaxed tolerance vs f32 reference.
    assert jnp.allclose(out, ref, atol=2e-2, rtol=2e-2), "mismatch vs reference"

    print("KERNEL_OK")
</pallas_src>

<mosaic_0001>
module attributes {stable_mosaic.version = 11 : i64} {
  func.func @cbow_kernel(%arg0: i32, %arg1: memref<8x8x256xbf16, #tpu.memory_space<vmem>>, %arg2: memref<8x8xf32, #tpu.memory_space<vmem>>, %arg3: memref<256x128xbf16, #tpu.memory_space<vmem>>, %arg4: memref<1x128xf32, #tpu.memory_space<vmem>>, %arg5: memref<128x256xbf16, #tpu.memory_space<vmem>>, %arg6: memref<1x256xf32, #tpu.memory_space<vmem>>, %arg7: memref<8x256xf32, #tpu.memory_space<vmem>>) attributes {dimension_semantics = [#tpu.dimension_semantics<arbitrary>], iteration_bounds = array<i64: 1>, scalar_prefetch = 0 : i64, scratch_operands = 0 : i64, tpu.core_type = #tpu.core_type<tc>, window_params = [{pipeline_mode = #tpu.pipeline_mode<synchronous>, transform_indices = @transform_0, window_bounds = array<i64: 8, 8, 256>}, {pipeline_mode = #tpu.pipeline_mode<synchronous>, transform_indices = @transform_1, window_bounds = array<i64: 8, 8>}, {pipeline_mode = #tpu.pipeline_mode<synchronous>, transform_indices = @transform_2, window_bounds = array<i64: 256, 128>}, {pipeline_mode = #tpu.pipeline_mode<synchronous>, transform_indices = @transform_3, window_bounds = array<i64: 1, 128>}, {pipeline_mode = #tpu.pipeline_mode<synchronous>, transform_indices = @transform_4, window_bounds = array<i64: 128, 256>}, {pipeline_mode = #tpu.pipeline_mode<synchronous>, transform_indices = @transform_5, window_bounds = array<i64: 1, 256>}, {pipeline_mode = #tpu.pipeline_mode<synchronous>, transform_indices = @transform_6, window_bounds = array<i64: 8, 256>}]} {
    %c0 = arith.constant 0 : index
    %c0_0 = arith.constant 0 : index
    %0 = vector.load %arg2[%c0, %c0_0] : memref<8x8xf32, #tpu.memory_space<vmem>>, vector<8x8xf32>
    %c0_1 = arith.constant 0 : index
    %c0_2 = arith.constant 0 : index
    %c0_3 = arith.constant 0 : index
    %1 = vector.load %arg1[%c0_1, %c0_2, %c0_3] : memref<8x8x256xbf16, #tpu.memory_space<vmem>>, vector<8x8x256xbf16>
    %2 = arith.extf %1 : vector<8x8x256xbf16> to vector<8x8x256xf32>
    %3 = vector.shape_cast %0 : vector<8x8xf32> to vector<8x8x1xf32>
    %4 = vector.broadcast %3 : vector<8x8x1xf32> to vector<8x8x256xf32>
    %5 = arith.mulf %4, %2 : vector<8x8x256xf32>
    %cst = arith.constant dense<0.000000e+00> : vector<8x256xf32>
    %6 = vector.multi_reduction <add>, %5, %cst [1] : vector<8x8x256xf32> to vector<8x256xf32>
    %cst_4 = arith.constant dense<0.000000e+00> : vector<8xf32>
    %7 = vector.multi_reduction <add>, %0, %cst_4 [1] : vector<8x8xf32> to vector<8xf32>
    %8 = vector.shape_cast %7 : vector<8xf32> to vector<8x1xf32>
    %9 = arith.truncf %6 : vector<8x256xf32> to vector<8x256xbf16>
    %c0_5 = arith.constant 0 : index
    %c0_6 = arith.constant 0 : index
    %10 = vector.load %arg3[%c0_5, %c0_6] : memref<256x128xbf16, #tpu.memory_space<vmem>>, vector<256x128xbf16>
    %cst_7 = arith.constant dense<0.000000e+00> : vector<8x128xf32>
    %11 = tpu.matmul %9, %10, %cst_7 {dimension_numbers = #tpu.dot_dimension_numbers<[1], [0], [0], [1], [0, 0, 1, 1], [], []>} : vector<8x256xbf16>, vector<256x128xbf16>, vector<8x128xf32> -> vector<8x128xf32>
    %c0_8 = arith.constant 0 : index
    %c0_9 = arith.constant 0 : index
    %12 = vector.load %arg4[%c0_8, %c0_9] : memref<1x128xf32, #tpu.memory_space<vmem>>, vector<1x128xf32>
    %13 = vector.broadcast %8 : vector<8x1xf32> to vector<8x128xf32>
    %14 = vector.broadcast %12 : vector<1x128xf32> to vector<8x128xf32>
    %15 = arith.mulf %13, %14 : vector<8x128xf32>
    %16 = arith.addf %11, %15 : vector<8x128xf32>
    %17 = arith.truncf %16 : vector<8x128xf32> to vector<8x128xbf16>
    %c0_10 = arith.constant 0 : index
    %c0_11 = arith.constant 0 : index
    %18 = vector.load %arg5[%c0_10, %c0_11] : memref<128x256xbf16, #tpu.memory_space<vmem>>, vector<128x256xbf16>
    %cst_12 = arith.constant dense<0.000000e+00> : vector<8x256xf32>
    %19 = tpu.matmul %17, %18, %cst_12 {dimension_numbers = #tpu.dot_dimension_numbers<[1], [0], [0], [1], [0, 0, 1, 1], [], []>} : vector<8x128xbf16>, vector<128x256xbf16>, vector<8x256xf32> -> vector<8x256xf32>
    %c0_13 = arith.constant 0 : index
    %c0_14 = arith.constant 0 : index
    %20 = vector.load %arg6[%c0_13, %c0_14] : memref<1x256xf32, #tpu.memory_space<vmem>>, vector<1x256xf32>
    %21 = vector.broadcast %20 : vector<1x256xf32> to vector<8x256xf32>
    %22 = arith.addf %19, %21 : vector<8x256xf32>
    %c0_15 = arith.constant 0 : index
    %c0_16 = arith.constant 0 : index
    %23 = vector.load %arg7[%c0_15, %c0_16] : memref<8x256xf32, #tpu.memory_space<vmem>>, vector<8x256xf32>
    tpu.vector_store %arg7[%c0_15, %c0_16], %22 {strides = array<i32>} : memref<8x256xf32, #tpu.memory_space<vmem>>, vector<8x256xf32>,
    return
  }
  func.func @transform_0(%arg0: i32) -> (i32, i32, i32) {
    %c0_i32 = arith.constant 0 : i32
    %c0_i32_0 = arith.constant 0 : i32
    %c0_i32_1 = arith.constant 0 : i32
    %c0_i32_2 = arith.constant 0 : i32
    return %c0_i32, %c0_i32_0, %c0_i32_1 : i32, i32, i32
  }
  func.func @transform_1(%arg0: i32) -> (i32, i32) {
    %c0_i32 = arith.constant 0 : i32
    %c0_i32_0 = arith.constant 0 : i32
    %c0_i32_1 = arith.constant 0 : i32
    return %c0_i32, %c0_i32_0 : i32, i32
  }
  func.func @transform_2(%arg0: i32) -> (i32, i32) {
    %c0_i32 = arith.constant 0 : i32
    %c0_i32_0 = arith.constant 0 : i32
    %c0_i32_1 = arith.constant 0 : i32
    return %c0_i32, %c0_i32_0 : i32, i32
  }
  func.func @transform_3(%arg0: i32) -> (i32, i32) {
    %c0_i32 = arith.constant 0 : i32
    %c0_i32_0 = arith.constant 0 : i32
    %c0_i32_1 = arith.constant 0 : i32
    return %c0_i32, %c0_i32_0 : i32, i32
  }
  func.func @transform_4(%arg0: i32) -> (i32, i32) {
    %c0_i32 = arith.constant 0 : i32
    %c0_i32_0 = arith.constant 0 : i32
    %c0_i32_1 = arith.constant 0 : i32
    return %c0_i32, %c0_i32_0 : i32, i32
  }
  func.func @transform_5(%arg0: i32) -> (i32, i32) {
    %c0_i32 = arith.constant 0 : i32
    %c0_i32_0 = arith.constant 0 : i32
    %c0_i32_1 = arith.constant 0 : i32
    return %c0_i32, %c0_i32_0 : i32, i32
  }
  func.func @transform_6(%arg0: i32) -> (i32, i32) {
    %c0_i32 = arith.constant 0 : i32
    %c0_i32_0 = arith.constant 0 : i32
    %c0_i32_1 = arith.constant 0 : i32
    return %c0_i32, %c0_i32_0 : i32, i32
  }
}

</mosaic_0001>

<llo_original>
// kernel: tpu_custom_call.1
$region0: #{tpu_custom_call.1}
  #allocation0 [shape = 'u32[]', space=smem, size = 0x4, offset = 0x4, fixed_abs, tag = 'smem constant byte address 0x4 - core index']
  #allocation1 [shape = 'u32[144,128]{1,0:T(1,128)}', space=vmem, size = 0x12000, scoped, tag = 'internal scratch']
  %s0 = inlined_call_operand.hbm [shape: bf16[8,8,256], index: 0, kind: input, shape index: {}]
  %s1 = inlined_call_operand.hbm [shape: f32[8,8], index: 1, kind: input, shape index: {}]
  %s2 = inlined_call_operand.hbm [shape: bf16[256,128], index: 2, kind: input, shape index: {}]
  %s3 = inlined_call_operand.vmem [shape: f32[1,128], index: 3, kind: input, shape index: {}]
  %s4 = inlined_call_operand.hbm [shape: bf16[128,256], index: 4, kind: input, shape index: {}]
  %s5 = inlined_call_operand.vmem [shape: f32[1,256], index: 5, kind: input, shape index: {}]
  %s6 = inlined_call_operand.hbm [shape: f32[8,256], index: 6, kind: output, shape index: {}]
  %s7 = sld [smem:[#allocation0]]
  $region50: #{tpu_custom_call.1} parent=0
    _
  %s9 = ssub.s32 1, %s7
  %s10 = scalar_select 0, %s9, %s7
  $region1: #{tpu_custom_call.1} parent=0
    #allocation2 [shape = 'u8[32768]{0}', space=vmem, size = 0x8000, scoped, tag = 'input window, operand 0, single buffered']
    #allocation3 [shape = 's32[1]{0}', space=sflag, size = 0x4, scoped, tag = 'scoped memory for tpu_custom_call.1']
    #allocation4 [shape = 's32[1]{0}', space=sflag, size = 0x4, scoped, tag = 'scoped memory for tpu_custom_call.1']
    #allocation5 [shape = 'u8[4096]{0}', space=vmem, size = 0x1000, scoped, tag = 'input window, operand 1, single buffered']
    #allocation6 [shape = 's32[1]{0}', space=sflag, size = 0x4, scoped, tag = 'scoped memory for tpu_custom_call.1']
    #allocation7 [shape = 'u8[65536]{0}', space=vmem, size = 0x10000, scoped, tag = 'input window, operand 2, single buffered']
    #allocation8 [shape = 'u8[65536]{0}', space=vmem, size = 0x10000, scoped, tag = 'input window, operand 4, single buffered']
    #allocation9 [shape = 's32[1]{0}', space=sflag, size = 0x4, scoped, tag = 'scoped memory for tpu_custom_call.1']
    #allocation10 [shape = 'u8[8192]{0}', space=vmem, size = 0x2000, scoped, tag = 'output window, operand 0, single buffered']
    %11 = vsyncpa [#allocation3], 0
    %12 = vsyncpa [#allocation6], 0
    %13 = vsyncpa [#allocation9], 0
    %14 = vsyncpa [#allocation4], 0
    // Predicated region
    $region2: #{tpu_custom_call.1} parent=1 // pred_check
      _
    $region3: #{tpu_custom_call.1} parent=1 // pred_check_branch
      %16 = sbr.rel (0) target = $region5
    $region4: #{tpu_custom_call.1} parent=1 // pred_region
      %s18 = ssub.s32 1024, 1024
      %19 = vsyncadd [#allocation3], %s18
      %s20 = sshll.u32 [#allocation2], 4
      %s21 = int_to_ptr.vmem [resolvable:$true] %s20
      %26 = dma.hbm_to_vmem [thread:$0]  %s0, 1024, %s21, [#allocation3], 128, 128, 8
    $region5: #{tpu_custom_call.1} parent=1 // pred_fallthru
      _
    // Predicated region
    $region6: #{tpu_custom_call.1} parent=1 // pred_check
      _
    $region7: #{tpu_custom_call.1} parent=1 // pred_check_branch
      %28 = sbr.rel (0) target = $region9
    $region8: #{tpu_custom_call.1} parent=1 // pred_region
      %s30 = ssub.s32 128, 128
      %31 = vsyncadd [#allocation6], %s30
      %s33 = sshll.u32 [#allocation5], 4
      %s34 = int_to_ptr.vmem [resolvable:$true] %s33
      %36 = dma.hbm_to_vmem [thread:$0]  %s1, 128, %s34, [#allocation6]
    $region9: #{tpu_custom_call.1} parent=1 // pred_fallthru
      _
    // Predicated region
    $region10: #{tpu_custom_call.1} parent=1 // pred_check
      _
    $region11: #{tpu_custom_call.1} parent=1 // pred_check_branch
      %38 = sbr.rel (0) target = $region13
    $region12: #{tpu_custom_call.1} parent=1 // pred_region
      %s40 = ssub.s32 2048, 2048
      %41 = vsyncadd [#allocation6], %s40
      %s42 = sshll.u32 [#allocation7], 4
      %s43 = int_to_ptr.vmem [resolvable:$true] %s42
      %48 = dma.hbm_to_vmem [thread:$0]  %s2, 2048, %s43, [#allocation6], 64, 64, 4
    $region13: #{tpu_custom_call.1} parent=1 // pred_fallthru
      _
    // Predicated region
    $region14: #{tpu_custom_call.1} parent=1 // pred_check
      _
    $region15: #{tpu_custom_call.1} parent=1 // pred_check_branch
      %50 = sbr.rel (0) target = $region17
    $region16: #{tpu_custom_call.1} parent=1 // pred_region
      _
    $region17: #{tpu_custom_call.1} parent=1 // pred_fallthru
      _
    // Predicated region
    $region18: #{tpu_custom_call.1} parent=1 // pred_check
      _
    $region19: #{tpu_custom_call.1} parent=1 // pred_check_branch
      %52 = sbr.rel (0) target = $region21
    $region20: #{tpu_custom_call.1} parent=1 // pred_region
      %s54 = ssub.s32 2048, 2048
      %55 = vsyncadd [#allocation9], %s54
      %s56 = sshll.u32 [#allocation8], 4
      %s57 = int_to_ptr.vmem [resolvable:$true] %s56
      %62 = dma.hbm_to_vmem [thread:$0]  %s4, 2048, %s57, [#allocation9], 128, 128, 8
    $region21: #{tpu_custom_call.1} parent=1 // pred_fallthru
      _
    // Predicated region
    $region22: #{tpu_custom_call.1} parent=1 // pred_check
      _
    $region23: #{tpu_custom_call.1} parent=1 // pred_check_branch
      %64 = sbr.rel (0) target = $region25
    $region24: #{tpu_custom_call.1} parent=1 // pred_region
      _
    $region25: #{tpu_custom_call.1} parent=1 // pred_fallthru
      _
    // Predicated region
    $region26: #{tpu_custom_call.1} parent=1 // pred_check
      _
    $region27: #{tpu_custom_call.1} parent=1 // pred_check_branch
      %66 = sbr.rel (0) target = $region29
    $region28: #{tpu_custom_call.1} parent=1 // pred_region
      %67 = dma.done [#allocation3], 1024
    $region29: #{tpu_custom_call.1} parent=1 // pred_fallthru
      _
    // Predicated region
    $region30: #{tpu_custom_call.1} parent=1 // pred_check
      _
    $region31: #{tpu_custom_call.1} parent=1 // pred_check_branch
      %69 = sbr.rel (0) target = $region33
    $region32: #{tpu_custom_call.1} parent=1 // pred_region
      %70 = dma.done [#allocation6], 128
    $region33: #{tpu_custom_call.1} parent=1 // pred_fallthru
      _
    // Predicated region
    $region34: #{tpu_custom_call.1} parent=1 // pred_check
      _
    $region35: #{tpu_custom_call.1} parent=1 // pred_check_branch
      %72 = sbr.rel (0) target = $region37
    $region36: #{tpu_custom_call.1} parent=1 // pred_region
      %73 = dma.done [#allocation6], 2048
    $region37: #{tpu_custom_call.1} parent=1 // pred_fallthru
      _
    // Predicated region
    $region38: #{tpu_custom_call.1} parent=1 // pred_check
      _
    $region39: #{tpu_custom_call.1} parent=1 // pred_check_branch
      %75 = sbr.rel (0) target = $region41
    $region40: #{tpu_custom_call.1} parent=1 // pred_region
      %76 = dma.done [#allocation9], 2048
    $region41: #{tpu_custom_call.1} parent=1 // pred_fallthru
      _
    %v78 = vld [vmem:[#allocation5] sm:$0xff]
    %v79 = vld [vmem:[#allocation2] sm:$0xff]
    %v80 = vld [vmem:[#allocation2 + $0x8] sm:$0xff]
    %v81 = vld [vmem:[#allocation2 + $0x10] sm:$0xff]
    %v82 = vld [vmem:[#allocation2 + $0x18] sm:$0xff]
    %v83 = vld [vmem:[#allocation2 + $0x20] sm:$0xff]
    %v84 = vld [vmem:[#allocation2 + $0x28] sm:$0xff]
    %v85 = vld [vmem:[#allocation2 + $0x30] sm:$0xff]
    %v86 = vld [vmem:[#allocation2 + $0x38] sm:$0xff]
    %v87 = vunpack.c.l.bf16 %v79
    %v88 = vunpack.c.h.bf16 %v79
    %v89 = vunpack.c.l.bf16 %v80
    %v90 = vunpack.c.h.bf16 %v80
    %v91 = vunpack.c.l.bf16 %v81
    %v92 = vunpack.c.h.bf16 %v81
    %v93 = vunpack.c.l.bf16 %v82
    %v94 = vunpack.c.h.bf16 %v82
    %v95 = vunpack.c.l.bf16 %v83
    %v96 = vunpack.c.h.bf16 %v83
    %v97 = vunpack.c.l.bf16 %v84
    %v98 = vunpack.c.h.bf16 %v84
    %v99 = vunpack.c.l.bf16 %v85
    %v100 = vunpack.c.h.bf16 %v85
    %v101 = vunpack.c.l.bf16 %v86
    %v102 = vunpack.c.h.bf16 %v86
    %v103 = vlaneseq
    %v104 = vshrl.u32 %v103, 7
    %v105 = vsub.s32 0, %v104
    %v106 = vrot.slane %v78, %v105
    %108 = vbcast.lane.b32.xlu0 %v106, 256
    %v109 = vpop.permute.xlu0 %108
    %v110 = vlaneseq
    %v111 = vshrl.u32 %v110, 7
    %v112 = vsub.s32 1, %v111
    %v113 = vrot.slane %v78, %v112
    %115 = vbcast.lane.b32.xlu0 %v113, 256
    %v116 = vpop.permute.xlu0 %115
    %v117 = vlaneseq
    %v118 = vshrl.u32 %v117, 7
    %v119 = vsub.s32 2, %v118
    %v120 = vrot.slane %v78, %v119
    %122 = vbcast.lane.b32.xlu0 %v120, 256
    %v123 = vpop.permute.xlu0 %122
    %v124 = vlaneseq
    %v125 = vshrl.u32 %v124, 7
    %v126 = vsub.s32 3, %v125
    %v127 = vrot.slane %v78, %v126
    %129 = vbcast.lane.b32.xlu0 %v127, 256
    %v130 = vpop.permute.xlu0 %129
    %v131 = vlaneseq
    %v132 = vshrl.u32 %v131, 7
    %v133 = vsub.s32 4, %v132
    %v134 = vrot.slane %v78, %v133
    %136 = vbcast.lane.b32.xlu0 %v134, 256
    %v137 = vpop.permute.xlu0 %136
    %v138 = vlaneseq
    %v139 = vshrl.u32 %v138, 7
    %v140 = vsub.s32 5, %v139
    %v141 = vrot.slane %v78, %v140
    %143 = vbcast.lane.b32.xlu0 %v141, 256
    %v144 = vpop.permute.xlu0 %143
    %v145 = vlaneseq
    %v146 = vshrl.u32 %v145, 7
    %v147 = vsub.s32 6, %v146
    %v148 = vrot.slane %v78, %v147
    %150 = vbcast.lane.b32.xlu0 %v148, 256
    %v151 = vpop.permute.xlu0 %150
    %v152 = vlaneseq
    %v153 = vshrl.u32 %v152, 7
    %v154 = vsub.s32 7, %v153
    %v155 = vrot.slane %v78, %v154
    %157 = vbcast.lane.b32.xlu0 %v155, 256
    %v158 = vpop.permute.xlu0 %157
    %v159 = vmul.f32 %v109, %v87
    %v160 = vmul.f32 %v109, %v88
    %v161 = vmul.f32 %v116, %v89
    %v162 = vmul.f32 %v116, %v90
    %v163 = vmul.f32 %v123, %v91
    %v164 = vmul.f32 %v123, %v92
    %v165 = vmul.f32 %v130, %v93
    %v166 = vmul.f32 %v130, %v94
    %v167 = vmul.f32 %v137, %v95
    %v168 = vmul.f32 %v137, %v96
    %v169 = vmul.f32 %v144, %v97
    %v170 = vmul.f32 %v144, %v98
    %v171 = vmul.f32 %v151, %v99
    %v172 = vmul.f32 %v151, %v100
    %v173 = vmul.f32 %v158, %v101
    %v174 = vmul.f32 %v158, %v102
    %v175 = vrot.slane %v159, 4
    %v176 = vadd.f32 %v159, %v175
    %v177 = vrot.slane %v176, 2
    %v178 = vadd.f32 %v176, %v177
    %v179 = vrot.slane %v178, 1
    %v180 = vadd.f32 %v178, %v179
    %v181 = vrot.slane %v160, 4
    %v182 = vadd.f32 %v160, %v181
    %v183 = vrot.slane %v182, 2
    %v184 = vadd.f32 %v182, %v183
    %v185 = vrot.slane %v184, 1
    %v186 = vadd.f32 %v184, %v185
    %v187 = vrot.slane %v161, 4
    %v188 = vadd.f32 %v161, %v187
    %v189 = vrot.slane %v188, 2
    %v190 = vadd.f32 %v188, %v189
    %v191 = vrot.slane %v190, 1
    %v192 = vadd.f32 %v190, %v191
    %v193 = vrot.slane %v162, 4
    %v194 = vadd.f32 %v162, %v193
    %v195 = vrot.slane %v194, 2
    %v196 = vadd.f32 %v194, %v195
    %v197 = vrot.slane %v196, 1
    %v198 = vadd.f32 %v196, %v197
    %v199 = vrot.slane %v163, 4
    %v200 = vadd.f32 %v163, %v199
    %v201 = vrot.slane %v200, 2
    %v202 = vadd.f32 %v200, %v201
    %v203 = vrot.slane %v202, 1
    %v204 = vadd.f32 %v202, %v203
    %v205 = vrot.slane %v164, 4
    %v206 = vadd.f32 %v164, %v205
    %v207 = vrot.slane %v206, 2
    %v208 = vadd.f32 %v206, %v207
    %v209 = vrot.slane %v208, 1
    %v210 = vadd.f32 %v208, %v209
    %v211 = vrot.slane %v165, 4
    %v212 = vadd.f32 %v165, %v211
    %v213 = vrot.slane %v212, 2
    %v214 = vadd.f32 %v212, %v213
    %v215 = vrot.slane %v214, 1
    %v216 = vadd.f32 %v214, %v215
    %v217 = vrot.slane %v166, 4
    %v218 = vadd.f32 %v166, %v217
    %v219 = vrot.slane %v218, 2
    %v220 = vadd.f32 %v218, %v219
    %v221 = vrot.slane %v220, 1
    %v222 = vadd.f32 %v220, %v221
    %v223 = vrot.slane %v167, 4
    %v224 = vadd.f32 %v167, %v223
    %v225 = vrot.slane %v224, 2
    %v226 = vadd.f32 %v224, %v225
    %v227 = vrot.slane %v226, 1
    %v228 = vadd.f32 %v226, %v227
    %v229 = vrot.slane %v168, 4
    %v230 = vadd.f32 %v168, %v229
    %v231 = vrot.slane %v230, 2
    %v232 = vadd.f32 %v230, %v231
    %v233 = vrot.slane %v232, 1
    %v234 = vadd.f32 %v232, %v233
    %v235 = vrot.slane %v169, 4
    %v236 = vadd.f32 %v169, %v235
    %v237 = vrot.slane %v236, 2
    %v238 = vadd.f32 %v236, %v237
    %v239 = vrot.slane %v238, 1
    %v240 = vadd.f32 %v238, %v239
    %v241 = vrot.slane %v170, 4
    %v242 = vadd.f32 %v170, %v241
    %v243 = vrot.slane %v242, 2
    %v244 = vadd.f32 %v242, %v243
    %v245 = vrot.slane %v244, 1
    %v246 = vadd.f32 %v244, %v245
    %v247 = vrot.slane %v171, 4
    %v248 = vadd.f32 %v171, %v247
    %v249 = vrot.slane %v248, 2
    %v250 = vadd.f32 %v248, %v249
    %v251 = vrot.slane %v250, 1
    %v252 = vadd.f32 %v250, %v251
    %v253 = vrot.slane %v172, 4
    %v254 = vadd.f32 %v172, %v253
    %v255 = vrot.slane %v254, 2
    %v256 = vadd.f32 %v254, %v255
    %v257 = vrot.slane %v256, 1
    %v258 = vadd.f32 %v256, %v257
    %v259 = vrot.slane %v173, 4
    %v260 = vadd.f32 %v173, %v259
    %v261 = vrot.slane %v260, 2
    %v262 = vadd.f32 %v260, %v261
    %v263 = vrot.slane %v262, 1
    %v264 = vadd.f32 %v262, %v263
    %v265 = vrot.slane %v174, 4
    %v266 = vadd.f32 %v174, %v265
    %v267 = vrot.slane %v266, 2
    %v268 = vadd.f32 %v266, %v267
    %v269 = vrot.slane %v268, 1
    %v270 = vadd.f32 %v268, %v269
    %vm271 = vcmask 64512
    %v272 = vsel %vm271, %v78, 0.0
    %273 = vadd.xlane.f32.xlu0 %v272
    %v274 = vpop.xlane.xlu0 %273
    %v275 = vpack.c.bf16 %v180, %v180
    %v276 = vpack.c.bf16 %v186, %v186
    %v277 = vpack.c.bf16 %v192, %v192
    %v278 = vpack.c.bf16 %v198, %v198
    %v279 = vpack.c.bf16 %v204, %v204
    %v280 = vpack.c.bf16 %v210, %v210
    %v281 = vpack.c.bf16 %v216, %v216
    %v282 = vpack.c.bf16 %v222, %v222
    %v283 = vpack.c.bf16 %v228, %v228
    %v284 = vpack.c.bf16 %v234, %v234
    %v285 = vpack.c.bf16 %v240, %v240
    %v286 = vpack.c.bf16 %v246, %v246
    %v287 = vpack.c.bf16 %v252, %v252
    %v288 = vpack.c.bf16 %v258, %v258
    %v289 = vpack.c.bf16 %v264, %v264
    %v290 = vpack.c.bf16 %v270, %v270
    %v291 = vld [vmem:[#allocation7] sm:$0xf]
    %v292 = vld [vmem:[#allocation7 + $0x4] sm:$0xf]
    %v293 = vld [vmem:[#allocation7 + $0x8] sm:$0xf]
    %v294 = vld [vmem:[#allocation7 + $0xc] sm:$0xf]
    %v295 = vld [vmem:[#allocation7 + $0x10] sm:$0xf]
    %v296 = vld [vmem:[#allocation7 + $0x14] sm:$0xf]
    %v297 = vld [vmem:[#allocation7 + $0x18] sm:$0xf]
    %v298 = vld [vmem:[#allocation7 + $0x1c] sm:$0xf]
    %v299 = vld [vmem:[#allocation7 + $0x20] sm:$0xf]
    %v300 = vld [vmem:[#allocation7 + $0x24] sm:$0xf]
    %v301 = vld [vmem:[#allocation7 + $0x28] sm:$0xf]
    %v302 = vld [vmem:[#allocation7 + $0x2c] sm:$0xf]
    %v303 = vld [vmem:[#allocation7 + $0x30] sm:$0xf]
    %v304 = vld [vmem:[#allocation7 + $0x34] sm:$0xf]
    %v305 = vld [vmem:[#allocation7 + $0x38] sm:$0xf]
    %v306 = vld [vmem:[#allocation7 + $0x3c] sm:$0xf]
    %v307 = vld [vmem:[#allocation7 + $0x40] sm:$0xf]
    %v308 = vld [vmem:[#allocation7 + $0x44] sm:$0xf]
    %v309 = vld [vmem:[#allocation7 + $0x48] sm:$0xf]
    %v310 = vld [vmem:[#allocation7 + $0x4c] sm:$0xf]
    %v311 = vld [vmem:[#allocation7 + $0x50] sm:$0xf]
    %v312 = vld [vmem:[#allocation7 + $0x54] sm:$0xf]
    %v313 = vld [vmem:[#allocation7 + $0x58] sm:$0xf]
    %v314 = vld [vmem:[#allocation7 + $0x5c] sm:$0xf]
    %v315 = vld [vmem:[#allocation7 + $0x60] sm:$0xf]
    %v316 = vld [vmem:[#allocation7 + $0x64] sm:$0xf]
    %v317 = vld [vmem:[#allocation7 + $0x68] sm:$0xf]
    %v318 = vld [vmem:[#allocation7 + $0x6c] sm:$0xf]
    %v319 = vld [vmem:[#allocation7 + $0x70] sm:$0xf]
    %v320 = vld [vmem:[#allocation7 + $0x74] sm:$0xf]
    %v321 = vld [vmem:[#allocation7 + $0x78] sm:$0xf]
    %v322 = vld [vmem:[#allocation7 + $0x7c] sm:$0xf]
    %v323 = vld [vmem:[%s3] sm:$0x1]
    %v325 = vlaneseq
    %v326 = vshrl.u32 %v325, 7
    %v327 = vsub.s32 0, %v326
    %v328 = vrot.slane %v323, %v327
    %v330 = vmul.f32 %v274, %v328
    %v347 = vunpack.c.l.b16 %v275
    %v348 = vunpack.c.l.b16 %v276
    %v349 = vunpack.c.l.b16 %v277
    %v350 = vunpack.c.l.b16 %v278
    %v351 = vunpack.c.l.b16 %v279
    %v352 = vunpack.c.l.b16 %v280
    %v353 = vunpack.c.l.b16 %v281
    %v354 = vunpack.c.l.b16 %v282
    %v355 = vunpack.c.l.b16 %v283
    %v356 = vunpack.c.l.b16 %v284
    %v357 = vunpack.c.l.b16 %v285
    %v358 = vunpack.c.l.b16 %v286
    %v359 = vunpack.c.l.b16 %v287
    %v360 = vunpack.c.l.b16 %v288
    %v361 = vunpack.c.l.b16 %v289
    %v362 = vunpack.c.l.b16 %v290
    %vm363 = vcmask 1041409
    %v364 = vsel %vm363, %v349, %v347
    %vm365 = vcmask 1042434
    %v366 = vsel %vm365, %v351, %v364
    %vm367 = vcmask 1043459
    %v368 = vsel %vm367, %v353, %v366
    %vm369 = vcmask 1044484
    %v370 = vsel %vm369, %v355, %v368
    %vm371 = vcmask 1045509
    %v372 = vsel %vm371, %v357, %v370
    %vm373 = vcmask 1046534
    %v374 = vsel %vm373, %v359, %v372
    %vm375 = vcmask 1047559
    %v376 = vsel %vm375, %v361, %v374
    %v377 = vsel %vm363, %v350, %v348
    %v378 = vsel %vm365, %v352, %v377
    %v379 = vsel %vm367, %v354, %v378
    %v380 = vsel %vm369, %v356, %v379
    %v381 = vsel %vm371, %v358, %v380
    %v382 = vsel %vm373, %v360, %v381
    %v383 = vsel %vm375, %v362, %v382
    %v384 = vpack.c.b16 %v376, %v376
    %v385 = vpack.c.b16 %v383, %v383
    %v420 = vunpack.c.l.b16 %v291
    %v421 = vunpack.c.l.b16 %v292
    %v422 = vunpack.c.l.b16 %v293
    %v423 = vunpack.c.l.b16 %v294
    %v424 = vunpack.c.l.b16 %v295
    %v425 = vunpack.c.l.b16 %v296
    %v426 = vunpack.c.l.b16 %v297
    %v427 = vunpack.c.l.b16 %v298
    %v428 = vunpack.c.l.b16 %v299
    %v429 = vunpack.c.l.b16 %v300
    %v430 = vunpack.c.l.b16 %v301
    %v431 = vunpack.c.l.b16 %v302
    %v432 = vunpack.c.l.b16 %v303
    %v433 = vunpack.c.l.b16 %v304
    %v434 = vunpack.c.l.b16 %v305
    %v435 = vunpack.c.l.b16 %v306
    %v436 = vunpack.c.l.b16 %v307
    %v437 = vunpack.c.l.b16 %v308
    %v438 = vunpack.c.l.b16 %v309
    %v439 = vunpack.c.l.b16 %v310
    %v440 = vunpack.c.l.b16 %v311
    %v441 = vunpack.c.l.b16 %v312
    %v442 = vunpack.c.l.b16 %v313
    %v443 = vunpack.c.l.b16 %v314
    %v444 = vunpack.c.l.b16 %v315
    %v445 = vunpack.c.l.b16 %v316
    %v446 = vunpack.c.l.b16 %v317
    %v447 = vunpack.c.l.b16 %v318
    %v448 = vunpack.c.l.b16 %v319
    %v449 = vunpack.c.l.b16 %v320
    %v450 = vunpack.c.l.b16 %v321
    %v451 = vunpack.c.l.b16 %v322
    %v452 = vpack.c.b16 %v421, %v420
    %v453 = vpack.c.b16 %v423, %v422
    %v454 = vpack.c.b16 %v425, %v424
    %v455 = vpack.c.b16 %v427, %v426
    %v456 = vpack.c.b16 %v429, %v428
    %v457 = vpack.c.b16 %v431, %v430
    %v458 = vpack.c.b16 %v433, %v432
    %v459 = vpack.c.b16 %v435, %v434
    %v460 = vpack.c.b16 %v437, %v436
    %v461 = vpack.c.b16 %v439, %v438
    %v462 = vpack.c.b16 %v441, %v440
    %v463 = vpack.c.b16 %v443, %v442
    %v464 = vpack.c.b16 %v445, %v444
    %v465 = vpack.c.b16 %v447, %v446
    %v466 = vpack.c.b16 %v449, %v448
    %v467 = vpack.c.b16 %v451, %v450
    %484 = vmatprep.subr.bf16.mxu0 0
    %485 = vmatpush1.bf16.msra.mxu0 %v452
    %486 = vmatprep.subr.bf16.mxu0 0
    %487 = vmatpush1.bf16.msra.mxu0 %v453
    %488 = vmatprep.subr.bf16.mxu0 0
    %489 = vmatpush1.bf16.msra.mxu0 %v454
    %490 = vmatprep.subr.bf16.mxu0 0
    %491 = vmatpush1.bf16.msra.mxu0 %v455
    %492 = vmatprep.subr.bf16.mxu0 0
    %493 = vmatpush1.bf16.msra.mxu0 %v456
    %494 = vmatprep.subr.bf16.mxu0 0
    %495 = vmatpush1.bf16.msra.mxu0 %v457
    %496 = vmatprep.subr.bf16.mxu0 0
    %497 = vmatpush1.bf16.msra.mxu0 %v458
    %498 = vmatprep.subr.bf16.mxu0 0
    %499 = vmatpush1.bf16.msra.mxu0 %v459
    %500 = vmatprep.subr.bf16.mxu0 0
    %501 = vmatpush1.bf16.msra.mxu0 %v460
    %502 = vmatprep.subr.bf16.mxu0 0
    %503 = vmatpush1.bf16.msra.mxu0 %v461
    %504 = vmatprep.subr.bf16.mxu0 0
    %505 = vmatpush1.bf16.msra.mxu0 %v462
    %506 = vmatprep.subr.bf16.mxu0 0
    %507 = vmatpush1.bf16.msra.mxu0 %v463
    %508 = vmatprep.subr.bf16.mxu0 0
    %509 = vmatpush1.bf16.msra.mxu0 %v464
    %510 = vmatprep.subr.bf16.mxu0 0
    %511 = vmatpush1.bf16.msra.mxu0 %v465
    %512 = vmatprep.subr.bf16.mxu0 0
    %513 = vmatpush1.bf16.msra.mxu0 %v466
    %514 = vmatprep.subr.bf16.mxu0 0
    %515 = vmatpush1.bf16.msra.mxu0 %v467
    %516 = vmatprep.mubr.bf16.mxu0 %v385
    %517 = vmatmul.mubr.bf16.gmra.mrb[0].mxu0 %v384
    %v518 = vpop.f32.mrb[0].mxu0
    %v519 = vadd.f32 %v330, %v518
    %v520 = vpop.f32.mrb[0].mxu0
    %v521 = vpop.f32.mrb[0].mxu0
    %v522 = vpop.f32.mrb[0].mxu0
    %523 = vdwg.mxu0
    %v524 = vpack.c.bf16 %v519, %v519
    %v525 = vld [vmem:[#allocation8] sm:$0xff]
    %v526 = vld [vmem:[#allocation8 + $0x8] sm:$0xff]
    %v527 = vld [vmem:[#allocation8 + $0x10] sm:$0xff]
    %v528 = vld [vmem:[#allocation8 + $0x18] sm:$0xff]
    %v529 = vld [vmem:[#allocation8 + $0x20] sm:$0xff]
    %v530 = vld [vmem:[#allocation8 + $0x28] sm:$0xff]
    %v531 = vld [vmem:[#allocation8 + $0x30] sm:$0xff]
    %v532 = vld [vmem:[#allocation8 + $0x38] sm:$0xff]
    %v533 = vld [vmem:[#allocation8 + $0x40] sm:$0xff]
    %v534 = vld [vmem:[#allocation8 + $0x48] sm:$0xff]
    %v535 = vld [vmem:[#allocation8 + $0x50] sm:$0xff]
    %v536 = vld [vmem:[#allocation8 + $0x58] sm:$0xff]
    %v537 = vld [vmem:[#allocation8 + $0x60] sm:$0xff]
    %v538 = vld [vmem:[#allocation8 + $0x68] sm:$0xff]
    %v539 = vld [vmem:[#allocation8 + $0x70] sm:$0xff]
    %v540 = vld [vmem:[#allocation8 + $0x78] sm:$0xff]
    %v541 = vld [vmem:[%s5] sm:$0x3]
    %v543 = vlaneseq
    %v544 = vshrl.u32 %v543, 7
    %v545 = vsub.s32 0, %v544
    %v546 = vrot.slane %v541, %v545
    %v547 = vlaneseq
    %v548 = vshrl.u32 %v547, 7
    %v549 = vsub.s32 1, %v548
    %v550 = vrot.slane %v541, %v549
    %v569 = vunpack.c.l.b16 %v525
    %v570 = vunpack.c.h.b16 %v525
    %v571 = vunpack.c.l.b16 %v526
    %v572 = vunpack.c.h.b16 %v526
    %v573 = vunpack.c.l.b16 %v527
    %v574 = vunpack.c.h.b16 %v527
    %v575 = vunpack.c.l.b16 %v528
    %v576 = vunpack.c.h.b16 %v528
    %v577 = vunpack.c.l.b16 %v529
    %v578 = vunpack.c.h.b16 %v529
    %v579 = vunpack.c.l.b16 %v530
    %v580 = vunpack.c.h.b16 %v530
    %v581 = vunpack.c.l.b16 %v531
    %v582 = vunpack.c.h.b16 %v531
    %v583 = vunpack.c.l.b16 %v532
    %v584 = vunpack.c.h.b16 %v532
    %v585 = vunpack.c.l.b16 %v533
    %v586 = vunpack.c.h.b16 %v533
    %v587 = vunpack.c.l.b16 %v534
    %v588 = vunpack.c.h.b16 %v534
    %v589 = vunpack.c.l.b16 %v535
    %v590 = vunpack.c.h.b16 %v535
    %v591 = vunpack.c.l.b16 %v536
    %v592 = vunpack.c.h.b16 %v536
    %v593 = vunpack.c.l.b16 %v537
    %v594 = vunpack.c.h.b16 %v537
    %v595 = vunpack.c.l.b16 %v538
    %v596 = vunpack.c.h.b16 %v538
    %v597 = vunpack.c.l.b16 %v539
    %v598 = vunpack.c.h.b16 %v539
    %v599 = vunpack.c.l.b16 %v540
    %v600 = vunpack.c.h.b16 %v540
    %v601 = vpack.c.b16 %v571, %v569
    %v602 = vpack.c.b16 %v572, %v570
    %v603 = vpack.c.b16 %v575, %v573
    %v604 = vpack.c.b16 %v576, %v574
    %v605 = vpack.c.b16 %v579, %v577
    %v606 = vpack.c.b16 %v580, %v578
    %v607 = vpack.c.b16 %v583, %v581
    %v608 = vpack.c.b16 %v584, %v582
    %v609 = vpack.c.b16 %v587, %v585
    %v610 = vpack.c.b16 %v588, %v586
    %v611 = vpack.c.b16 %v591, %v589
    %v612 = vpack.c.b16 %v592, %v590
    %v613 = vpack.c.b16 %v595, %v593
    %v614 = vpack.c.b16 %v596, %v594
    %v615 = vpack.c.b16 %v599, %v597
    %v616 = vpack.c.b16 %v600, %v598
    %633 = vmatprep.subr.bf16.mxu0 %v602
    %634 = vmatpush1.bf16.msra.mxu0 %v601
    %635 = vmatprep.subr.bf16.mxu0 %v604
    %636 = vmatpush1.bf16.msra.mxu0 %v603
    %637 = vmatprep.subr.bf16.mxu0 %v606
    %638 = vmatpush1.bf16.msra.mxu0 %v605
    %639 = vmatprep.subr.bf16.mxu0 %v608
    %640 = vmatpush1.bf16.msra.mxu0 %v607
    %641 = vmatprep.subr.bf16.mxu0 %v610
    %642 = vmatpush1.bf16.msra.mxu0 %v609
    %643 = vmatprep.subr.bf16.mxu0 %v612
    %644 = vmatpush1.bf16.msra.mxu0 %v611
    %645 = vmatprep.subr.bf16.mxu0 %v614
    %646 = vmatpush1.bf16.msra.mxu0 %v613
    %647 = vmatprep.subr.bf16.mxu0 %v616
    %648 = vmatpush1.bf16.msra.mxu0 %v615
    %649 = vmatprep.subr.bf16.mxu0 0
    %650 = vmatpush1.bf16.msra.mxu0 0
    %651 = vmatprep.subr.bf16.mxu0 0
    %652 = vmatpush1.bf16.msra.mxu0 0
    %653 = vmatprep.subr.bf16.mxu0 0
    %654 = vmatpush1.bf16.msra.mxu0 0
    %655 = vmatprep.subr.bf16.mxu0 0
    %656 = vmatpush1.bf16.msra.mxu0 0
    %657 = vmatprep.subr.bf16.mxu0 0
    %658 = vmatpush1.bf16.msra.mxu0 0
    %659 = vmatprep.subr.bf16.mxu0 0
    %660 = vmatpush1.bf16.msra.mxu0 0
    %661 = vmatprep.subr.bf16.mxu0 0
    %662 = vmatpush1.bf16.msra.mxu0 0
    %663 = vmatprep.subr.bf16.mxu0 0
    %664 = vmatpush1.bf16.msra.mxu0 0
    %665 = vmatprep.mubr.bf16.mxu0 0
    %666 = vmatmul.mubr.bf16.gmra.mrb[0].mxu0 %v524
    %v667 = vpop.f32.mrb[0].mxu0
    %v668 = vadd.f32 %v546, %v667
    %v669 = vpop.f32.mrb[0].mxu0
    %v670 = vadd.f32 %v550, %v669
    %v671 = vpop.f32.mrb[0].mxu0
    %v672 = vpop.f32.mrb[0].mxu0
    %673 = vdwg.mxu0
    %674 = vst [vmem:[#allocation10] sm:$0xff] %v668
    %675 = vst [vmem:[#allocation10 + $0x8] sm:$0xff] %v670
    // Predicated region
    $region42: #{tpu_custom_call.1} parent=1 // pred_check
      _
    $region43: #{tpu_custom_call.1} parent=1 // pred_check_branch
      %677 = sbr.rel (0) target = $region45
    $region44: #{tpu_custom_call.1} parent=1 // pred_region
      %s679 = ssub.s32 256, 256
      %680 = vsyncadd [#allocation4], %s679
      %s682 = sshll.u32 [#allocation10], 4
      %s683 = int_to_ptr.vmem [resolvable:$true] %s682
      %685 = dma.vmem_to_hbm [thread:$0]  %s683, 256, %s6, [#allocation4]
    $region45: #{tpu_custom_call.1} parent=1 // pred_fallthru
      _
    // Predicated region
    $region46: #{tpu_custom_call.1} parent=1 // pred_check
      _
    $region47: #{tpu_custom_call.1} parent=1 // pred_check_branch
      %687 = sbr.rel (0) target = $region49
    $region48: #{tpu_custom_call.1} parent=1 // pred_region
      %688 = dma.done [#allocation4], 256
    $region49: #{tpu_custom_call.1} parent=1 // pred_fallthru
      _
    %689 = vsyncpa [#allocation3], 1
    %690 = vsyncpa [#allocation6], 1
    %691 = vsyncpa [#allocation9], 1
    %692 = vsyncpa [#allocation4], 1

</llo_original>
